<compile_context>
chip_gen: v6e
topology: v6e:2x2x1
jax: 0.10.0
libtpu: 0.0.40
codegen_flags: <defaults>
</compile_context>

<pallas_src>
import functools

import jax
import jax.numpy as jnp
from jax import lax
from jax.experimental import pallas as pl
from jax.experimental.pallas import tpu as pltpu


def _sdpa_kernel(q_ref, k_ref, v_ref, o_ref, *attn_out, scale, valid_lk):
    q = q_ref[...]          # (TB, TQ, D)    native dtype
    k = k_ref[...]          # (TB, Lk_p, D)  native dtype
    v = v_ref[...]          # (TB, Lk_p, Dv_p)

    # scores = q @ k^T : contract the last dims directly (no explicit transpose),
    # batch over the leading dim, accumulate in f32 on the MXU.
    s = lax.dot_general(
        q, k,
        dimension_numbers=(((2,), (2,)), ((0,), (0,))),
        preferred_element_type=jnp.float32)          # (TB, TQ, Lk_p) f32

    if scale is not None:
        s = s * jnp.float32(scale)                   # trace-time folded 1/temperature

    lk_p = s.shape[-1]
    if valid_lk != lk_p:
        # Mask out padded key columns so they get zero softmax weight.
        col = lax.broadcasted_iota(jnp.int32, s.shape, dimension=2)
        s = jnp.where(col < valid_lk, s, -jnp.inf)

    # softmax over the last axis (PyTorch Softmax(dim=2)), f32 throughout.
    m = jnp.max(s, axis=-1, keepdims=True)
    e = jnp.exp(s - m)
    denom = jnp.sum(e, axis=-1, keepdims=True)
    attn = e * pl.reciprocal(denom, approx=True)     # EUP approx reciprocal

    # dropout: identity (eval mode)

    # output = attn @ v : feed attn in v's dtype so bf16 inputs stay on the
    # fast MXU path; accumulate in f32.
    out = lax.dot_general(
        attn.astype(v.dtype), v,
        dimension_numbers=(((2,), (1,)), ((0,), (0,))),
        preferred_element_type=jnp.float32)          # (TB, TQ, Dv_p)

    o_ref[...] = out.astype(o_ref.dtype)
    if attn_out:
        attn_out[0][...] = attn.astype(attn_out[0].dtype)


def _round_up(x, m):
    return (x + m - 1) // m * m


def scaled_dot_product_attention(q, k, v, temperature=None, *, return_attn=True):
    """Pallas implementation of ScaledDotProductAttention.forward (mask=None)."""
    B, Lq, D = q.shape
    Bk, Lk, Dk = k.shape
    Bv, Lkv, Dv = v.shape
    assert D == Dk and Bk == B and Bv == B and Lkv == Lk

    # PyTorch uses `if self.temperature:` (falsy -> no scaling).
    scale = (1.0 / float(temperature)) if temperature else None

    # ---- pad to TPU-friendly shapes ----------------------------------------
    LANE, SUBLANE = 128, 8
    Lk_p = _round_up(Lk, LANE)          # lane-dense attn stores + (8,128) tiling
    Dv_p = _round_up(Dv, LANE)          # lane-dense output stores
    Lq_p = _round_up(Lq, SUBLANE)
    TQ = Lq_p if Lq_p <= 256 else 256   # Lq tile (second grid axis)
    Lq_pp = _round_up(Lq_p, TQ)

    # ---- pick how many batch elements per block (fills the MXU for tiny shapes)
    def _block_bytes(tb):
        n = tb * TQ * D * q.dtype.itemsize          # q tile
        n += tb * Lk_p * D * k.dtype.itemsize       # k tile (resident)
        n += tb * Lk_p * Dv_p * v.dtype.itemsize    # v tile (resident)
        n += tb * TQ * Dv_p * q.dtype.itemsize      # out tile
        n += tb * TQ * Lk_p * 4                     # f32 scores / attn intermediates
        if return_attn:
            n += tb * TQ * Lk_p * q.dtype.itemsize  # attn tile
        return n

    VMEM_BUDGET = 8 * 1024 * 1024                   # per block; ~2x when double-buffered
    TB = 1
    for cand in range(B, 0, -1):
        if B % cand == 0 and _block_bytes(cand) <= VMEM_BUDGET:
            TB = cand
            break

    # ---- pad the operands (zero padding; padded keys are masked in-kernel) --
    qp = jnp.pad(q, ((0, 0), (0, Lq_pp - Lq), (0, 0))) if Lq_pp != Lq else q
    kp = jnp.pad(k, ((0, 0), (0, Lk_p - Lk), (0, 0))) if Lk_p != Lk else k
    if Lk_p != Lk or Dv_p != Dv:
        vp = jnp.pad(v, ((0, 0), (0, Lk_p - Lk), (0, Dv_p - Dv)))
    else:
        vp = v

    grid = (B // TB, Lq_pp // TQ)

    in_specs = [
        pl.BlockSpec((TB, TQ, D), lambda b, i: (b, i, 0)),
        pl.BlockSpec((TB, Lk_p, D), lambda b, i: (b, 0, 0)),      # resident over Lq tiles
        pl.BlockSpec((TB, Lk_p, Dv_p), lambda b, i: (b, 0, 0)),   # resident over Lq tiles
    ]
    out_shape = [jax.ShapeDtypeStruct((B, Lq_pp, Dv_p), q.dtype)]
    out_specs = [pl.BlockSpec((TB, TQ, Dv_p), lambda b, i: (b, i, 0))]
    if return_attn:
        out_shape.append(jax.ShapeDtypeStruct((B, Lq_pp, Lk_p), q.dtype))
        out_specs.append(pl.BlockSpec((TB, TQ, Lk_p), lambda b, i: (b, i, 0)))

    kernel = functools.partial(_sdpa_kernel, scale=scale, valid_lk=Lk)

    results = pl.pallas_call(
        kernel,
        out_shape=tuple(out_shape),
        grid_spec=pltpu.PrefetchScalarGridSpec(
            num_scalar_prefetch=0,
            grid=grid,
            in_specs=in_specs,
            out_specs=tuple(out_specs),
        ),
        compiler_params=pltpu.CompilerParams(
            dimension_semantics=("parallel", "parallel"),
            vmem_limit_bytes=48 * 1024 * 1024),
    )(qp, kp, vp)

    if return_attn:
        out_p, attn_p = results
        return out_p[:, :Lq, :Dv], attn_p[:, :Lq, :Lk]
    (out_p,) = results
    return out_p[:, :Lq, :Dv]


def _reference(q, k, v, temperature=None):
    qf = q.astype(jnp.float32)
    kf = k.astype(jnp.float32)
    vf = v.astype(jnp.float32)
    s = jnp.einsum("bqd,bkd->bqk", qf, kf)
    if temperature:
        s = s / temperature
    attn = jax.nn.softmax(s, axis=2)
    out = jnp.einsum("bqk,bkd->bqd", attn, vf)
    return out, attn


if __name__ == "__main__":
    key = jax.random.PRNGKey(0)
    kq, kk, kv = jax.random.split(key, 3)

    B, Lq, Lk, D, Dv = 2, 8, 8, 32, 32
    temperature = float(D) ** 0.5   # standard scaling (module default is None)

    q = jax.random.normal(kq, (B, Lq, D), dtype=jnp.float32)
    k = jax.random.normal(kk, (B, Lk, D), dtype=jnp.float32)
    v = jax.random.normal(kv, (B, Lk, Dv), dtype=jnp.float32)

    # f32 path, returning (output, attn)
    out, attn = scaled_dot_product_attention(q, k, v, temperature=temperature)
    jax.block_until_ready((out, attn))

    ref_out, ref_attn = _reference(q, k, v, temperature=temperature)
    # approx reciprocal in the softmax -> ~1e-4 relative deviation; use 5e-3 tol.
    assert out.shape == (B, Lq, Dv) and attn.shape == (B, Lq, Lk)
    assert jnp.allclose(out, ref_out, atol=5e-3, rtol=5e-3), "output mismatch (f32)"
    assert jnp.allclose(attn, ref_attn, atol=5e-3, rtol=5e-3), "attn mismatch (f32)"

    # output-only variant (skips the attn HBM write)
    out_only = scaled_dot_product_attention(
        q, k, v, temperature=temperature, return_attn=False)
    jax.block_until_ready(out_only)
    assert jnp.allclose(out_only, ref_out, atol=5e-3, rtol=5e-3), "output mismatch (no-attn)"

    # bf16 path: operands feed the MXU directly in bf16.
    qb, kb, vb = (x.astype(jnp.bfloat16) for x in (q, k, v))
    out_b, attn_b = scaled_dot_product_attention(qb, kb, vb, temperature=temperature)
    jax.block_until_ready((out_b, attn_b))
    ref_out_b, ref_attn_b = _reference(qb, kb, vb, temperature=temperature)
    assert jnp.allclose(out_b.astype(jnp.float32), ref_out_b, atol=5e-2, rtol=5e-2), \
        "output mismatch (bf16)"
    assert jnp.allclose(attn_b.astype(jnp.float32), ref_attn_b, atol=5e-2, rtol=5e-2), \
        "attn mismatch (bf16)"

    print("KERNEL_OK")
</pallas_src>

<mosaic_0001>
module attributes {stable_mosaic.version = 11 : i64} {
  func.func @_sdpa_kernel(%arg0: i32, %arg1: i32, %arg2: memref<2x8x32xf32, #tpu.memory_space<vmem>>, %arg3: memref<2x128x32xf32, #tpu.memory_space<vmem>>, %arg4: memref<2x128x128xf32, #tpu.memory_space<vmem>>, %arg5: memref<2x8x128xf32, #tpu.memory_space<vmem>>, %arg6: memref<2x8x128xf32, #tpu.memory_space<vmem>>) attributes {dimension_semantics = [#tpu.dimension_semantics<parallel>, #tpu.dimension_semantics<parallel>], iteration_bounds = array<i64: 1, 1>, scalar_prefetch = 0 : i64, scratch_operands = 0 : i64, tpu.core_type = #tpu.core_type<tc>, window_params = [{transform_indices = @transform_0, window_bounds = array<i64: 2, 8, 32>}, {transform_indices = @transform_1, window_bounds = array<i64: 2, 128, 32>}, {transform_indices = @transform_2, window_bounds = array<i64: 2, 128, 128>}, {transform_indices = @transform_3, window_bounds = array<i64: 2, 8, 128>}, {transform_indices = @transform_4, window_bounds = array<i64: 2, 8, 128>}]} {
    %c0 = arith.constant 0 : index
    %c0_0 = arith.constant 0 : index
    %c0_1 = arith.constant 0 : index
    %0 = vector.load %arg2[%c0, %c0_0, %c0_1] : memref<2x8x32xf32, #tpu.memory_space<vmem>>, vector<2x8x32xf32>
    %c0_2 = arith.constant 0 : index
    %c0_3 = arith.constant 0 : index
    %c0_4 = arith.constant 0 : index
    %1 = vector.load %arg3[%c0_2, %c0_3, %c0_4] : memref<2x128x32xf32, #tpu.memory_space<vmem>>, vector<2x128x32xf32>
    %c0_5 = arith.constant 0 : index
    %c0_6 = arith.constant 0 : index
    %c0_7 = arith.constant 0 : index
    %2 = vector.load %arg4[%c0_5, %c0_6, %c0_7] : memref<2x128x128xf32, #tpu.memory_space<vmem>>, vector<2x128x128xf32>
    %cst = arith.constant dense<0.000000e+00> : vector<2x8x128xf32>
    %3 = tpu.matmul %0, %1, %cst {dimension_numbers = #tpu.dot_dimension_numbers<[2], [2], [1], [1], [0, 0, 0, 1, 1, 1], [0], [0]>} : vector<2x8x32xf32>, vector<2x128x32xf32>, vector<2x8x128xf32> -> vector<2x8x128xf32>
    %cst_8 = arith.constant 0.176776692 : f32
    %4 = vector.broadcast %cst_8 : f32 to vector<2x8x128xf32>
    %5 = arith.mulf %3, %4 : vector<2x8x128xf32>
    %6 = tpu.iota {dimensions = array<i32: 2>} : vector<2x8x128xi32>
    %c8_i32 = arith.constant 8 : i32
    %7 = vector.broadcast %c8_i32 : i32 to vector<2x8x128xi32>
    %8 = arith.cmpi slt, %6, %7 : vector<2x8x128xi32>
    %cst_9 = arith.constant 0xFF800000 : f32
    %9 = vector.broadcast %cst_9 : f32 to vector<2x8x128xf32>
    %10 = arith.select %8, %5, %9 : vector<2x8x128xi1>, vector<2x8x128xf32>
    %cst_10 = arith.constant dense<0xFF800000> : vector<2x8xf32>
    %11 = vector.multi_reduction <maximumf>, %10, %cst_10 [2] : vector<2x8x128xf32> to vector<2x8xf32>
    %12 = vector.shape_cast %11 : vector<2x8xf32> to vector<2x8x1xf32>
    %13 = vector.broadcast %12 : vector<2x8x1xf32> to vector<2x8x128xf32>
    %14 = arith.subf %10, %13 : vector<2x8x128xf32>
    %15 = math.exp %14 : vector<2x8x128xf32>
    %cst_11 = arith.constant dense<0.000000e+00> : vector<2x8xf32>
    %16 = vector.multi_reduction <add>, %15, %cst_11 [2] : vector<2x8x128xf32> to vector<2x8xf32>
    %17 = vector.shape_cast %16 : vector<2x8xf32> to vector<2x8x1xf32>
    %18 = tpu.reciprocal %17 {approx = true} : vector<2x8x1xf32> -> vector<2x8x1xf32>
    %19 = vector.broadcast %18 : vector<2x8x1xf32> to vector<2x8x128xf32>
    %20 = arith.mulf %15, %19 : vector<2x8x128xf32>
    %cst_12 = arith.constant dense<0.000000e+00> : vector<2x8x128xf32>
    %21 = tpu.matmul %20, %2, %cst_12 {dimension_numbers = #tpu.dot_dimension_numbers<[2], [1], [1], [2], [0, 0, 0, 1, 1, 2], [0], [0]>} : vector<2x8x128xf32>, vector<2x128x128xf32>, vector<2x8x128xf32> -> vector<2x8x128xf32>
    %c0_13 = arith.constant 0 : index
    %c0_14 = arith.constant 0 : index
    %c0_15 = arith.constant 0 : index
    %22 = vector.load %arg5[%c0_13, %c0_14, %c0_15] : memref<2x8x128xf32, #tpu.memory_space<vmem>>, vector<2x8x128xf32>
    tpu.vector_store %arg5[%c0_13, %c0_14, %c0_15], %21 {strides = array<i32>} : memref<2x8x128xf32, #tpu.memory_space<vmem>>, vector<2x8x128xf32>,
    %c0_16 = arith.constant 0 : index
    %c0_17 = arith.constant 0 : index
    %c0_18 = arith.constant 0 : index
    %23 = vector.load %arg6[%c0_16, %c0_17, %c0_18] : memref<2x8x128xf32, #tpu.memory_space<vmem>>, vector<2x8x128xf32>
    tpu.vector_store %arg6[%c0_16, %c0_17, %c0_18], %20 {strides = array<i32>} : memref<2x8x128xf32, #tpu.memory_space<vmem>>, vector<2x8x128xf32>,
    return
  }
  func.func @transform_0(%arg0: i32, %arg1: i32) -> (i32, i32, i32) {
    %c0_i32 = arith.constant 0 : i32
    %c0_i32_0 = arith.constant 0 : i32
    return %arg0, %arg1, %c0_i32 : i32, i32, i32
  }
  func.func @transform_1(%arg0: i32, %arg1: i32) -> (i32, i32, i32) {
    %c0_i32 = arith.constant 0 : i32
    %c0_i32_0 = arith.constant 0 : i32
    %c0_i32_1 = arith.constant 0 : i32
    return %arg0, %c0_i32, %c0_i32_0 : i32, i32, i32
  }
  func.func @transform_2(%arg0: i32, %arg1: i32) -> (i32, i32, i32) {
    %c0_i32 = arith.constant 0 : i32
    %c0_i32_0 = arith.constant 0 : i32
    %c0_i32_1 = arith.constant 0 : i32
    return %arg0, %c0_i32, %c0_i32_0 : i32, i32, i32
  }
  func.func @transform_3(%arg0: i32, %arg1: i32) -> (i32, i32, i32) {
    %c0_i32 = arith.constant 0 : i32
    %c0_i32_0 = arith.constant 0 : i32
    return %arg0, %arg1, %c0_i32 : i32, i32, i32
  }
  func.func @transform_4(%arg0: i32, %arg1: i32) -> (i32, i32, i32) {
    %c0_i32 = arith.constant 0 : i32
    %c0_i32_0 = arith.constant 0 : i32
    return %arg0, %arg1, %c0_i32 : i32, i32, i32
  }
}

</mosaic_0001>

<llo_original>
// kernel: tpu_custom_call.1
$region0: #{tpu_custom_call.1}
  #allocation0 [shape = 'u32[]', space=smem, size = 0x4, offset = 0x4, fixed_abs, tag = 'smem constant byte address 0x4 - core index']
  #allocation1 [shape = 'u32[144,128]{1,0:T(1,128)}', space=vmem, size = 0x12000, scoped, tag = 'internal scratch']
  %s0 = inlined_call_operand.vmem [shape: f32[2,8,32], index: 0, kind: input, shape index: {}]
  %s1 = inlined_call_operand.vmem [shape: f32[2,128,32], index: 1, kind: input, shape index: {}]
  %s2 = inlined_call_operand.vmem [shape: f32[2,128,128], index: 2, kind: input, shape index: {}]
  %s3 = inlined_call_operand.hbm [shape: f32[2,8,128], index: 3, kind: output, shape index: {0}]
  %s4 = inlined_call_operand.hbm [shape: f32[2,8,128], index: 4, kind: output, shape index: {1}]
  %5 = xla_tuple %s3, %s4
  %s6 = sld [smem:[#allocation0]]
  $region30: #{tpu_custom_call.1} parent=0
    _
  %s8 = ssub.s32 1, %s6
  %s9 = scalar_select 0, %s8, %s6
  $region1: #{tpu_custom_call.1} parent=0
    #allocation2 [shape = 'u8[8192]{0}', space=vmem, size = 0x2000, scoped, tag = 'output window, operand 0, single buffered']
    #allocation3 [shape = 's32[1]{0}', space=sflag, size = 0x4, scoped, tag = 'scoped memory for tpu_custom_call.1']
    #allocation4 [shape = 'u8[8192]{0}', space=vmem, size = 0x2000, scoped, tag = 'output window, operand 1, single buffered']
    #allocation5 [shape = 's32[1]{0}', space=sflag, size = 0x4, scoped, tag = 'scoped memory for tpu_custom_call.1']
    %10 = vsyncpa [#allocation3], 0
    %11 = vsyncpa [#allocation5], 0
    // Predicated region
    $region2: #{tpu_custom_call.1} parent=1 // pred_check
      _
    $region3: #{tpu_custom_call.1} parent=1 // pred_check_branch
      %13 = sbr.rel (0) target = $region5
    $region4: #{tpu_custom_call.1} parent=1 // pred_region
      _
    $region5: #{tpu_custom_call.1} parent=1 // pred_fallthru
      _
    // Predicated region
    $region6: #{tpu_custom_call.1} parent=1 // pred_check
      _
    $region7: #{tpu_custom_call.1} parent=1 // pred_check_branch
      %15 = sbr.rel (0) target = $region9
    $region8: #{tpu_custom_call.1} parent=1 // pred_region
      _
    $region9: #{tpu_custom_call.1} parent=1 // pred_fallthru
      _
    // Predicated region
    $region10: #{tpu_custom_call.1} parent=1 // pred_check
      _
    $region11: #{tpu_custom_call.1} parent=1 // pred_check_branch
      %17 = sbr.rel (0) target = $region13
    $region12: #{tpu_custom_call.1} parent=1 // pred_region
      _
    $region13: #{tpu_custom_call.1} parent=1 // pred_fallthru
      _
    %v18 = vld [vmem:[%s0] sm:$0xff]
    %v19 = vld [vmem:[%s0 + $0x8] sm:$0xff]
    %v20 = vld [vmem:[%s1] sm:$0xff]
    %v21 = vld [vmem:[%s1 + $0x8] sm:$0xff]
    %v22 = vld [vmem:[%s1 + $0x10] sm:$0xff]
    %v23 = vld [vmem:[%s1 + $0x18] sm:$0xff]
    %v24 = vld [vmem:[%s1 + $0x20] sm:$0xff]
    %v25 = vld [vmem:[%s1 + $0x28] sm:$0xff]
    %v26 = vld [vmem:[%s1 + $0x30] sm:$0xff]
    %v27 = vld [vmem:[%s1 + $0x38] sm:$0xff]
    %v28 = vld [vmem:[%s1 + $0x40] sm:$0xff]
    %v29 = vld [vmem:[%s1 + $0x48] sm:$0xff]
    %v30 = vld [vmem:[%s1 + $0x50] sm:$0xff]
    %v31 = vld [vmem:[%s1 + $0x58] sm:$0xff]
    %v32 = vld [vmem:[%s1 + $0x60] sm:$0xff]
    %v33 = vld [vmem:[%s1 + $0x68] sm:$0xff]
    %v34 = vld [vmem:[%s1 + $0x70] sm:$0xff]
    %v35 = vld [vmem:[%s1 + $0x78] sm:$0xff]
    %v36 = vld [vmem:[%s1 + $0x80] sm:$0xff]
    %v37 = vld [vmem:[%s1 + $0x88] sm:$0xff]
    %v38 = vld [vmem:[%s1 + $0x90] sm:$0xff]
    %v39 = vld [vmem:[%s1 + $0x98] sm:$0xff]
    %v40 = vld [vmem:[%s1 + $0xa0] sm:$0xff]
    %v41 = vld [vmem:[%s1 + $0xa8] sm:$0xff]
    %v42 = vld [vmem:[%s1 + $0xb0] sm:$0xff]
    %v43 = vld [vmem:[%s1 + $0xb8] sm:$0xff]
    %v44 = vld [vmem:[%s1 + $0xc0] sm:$0xff]
    %v45 = vld [vmem:[%s1 + $0xc8] sm:$0xff]
    %v46 = vld [vmem:[%s1 + $0xd0] sm:$0xff]
    %v47 = vld [vmem:[%s1 + $0xd8] sm:$0xff]
    %v48 = vld [vmem:[%s1 + $0xe0] sm:$0xff]
    %v49 = vld [vmem:[%s1 + $0xe8] sm:$0xff]
    %v50 = vld [vmem:[%s1 + $0xf0] sm:$0xff]
    %v51 = vld [vmem:[%s1 + $0xf8] sm:$0xff]
    %v52 = vld [vmem:[%s2] sm:$0xff]
    %v53 = vld [vmem:[%s2 + $0x8] sm:$0xff]
    %v54 = vld [vmem:[%s2 + $0x10] sm:$0xff]
    %v55 = vld [vmem:[%s2 + $0x18] sm:$0xff]
    %v56 = vld [vmem:[%s2 + $0x20] sm:$0xff]
    %v57 = vld [vmem:[%s2 + $0x28] sm:$0xff]
    %v58 = vld [vmem:[%s2 + $0x30] sm:$0xff]
    %v59 = vld [vmem:[%s2 + $0x38] sm:$0xff]
    %v60 = vld [vmem:[%s2 + $0x40] sm:$0xff]
    %v61 = vld [vmem:[%s2 + $0x48] sm:$0xff]
    %v62 = vld [vmem:[%s2 + $0x50] sm:$0xff]
    %v63 = vld [vmem:[%s2 + $0x58] sm:$0xff]
    %v64 = vld [vmem:[%s2 + $0x60] sm:$0xff]
    %v65 = vld [vmem:[%s2 + $0x68] sm:$0xff]
    %v66 = vld [vmem:[%s2 + $0x70] sm:$0xff]
    %v67 = vld [vmem:[%s2 + $0x78] sm:$0xff]
    %v68 = vld [vmem:[%s2 + $0x80] sm:$0xff]
    %v69 = vld [vmem:[%s2 + $0x88] sm:$0xff]
    %v70 = vld [vmem:[%s2 + $0x90] sm:$0xff]
    %v71 = vld [vmem:[%s2 + $0x98] sm:$0xff]
    %v72 = vld [vmem:[%s2 + $0xa0] sm:$0xff]
    %v73 = vld [vmem:[%s2 + $0xa8] sm:$0xff]
    %v74 = vld [vmem:[%s2 + $0xb0] sm:$0xff]
    %v75 = vld [vmem:[%s2 + $0xb8] sm:$0xff]
    %v76 = vld [vmem:[%s2 + $0xc0] sm:$0xff]
    %v77 = vld [vmem:[%s2 + $0xc8] sm:$0xff]
    %v78 = vld [vmem:[%s2 + $0xd0] sm:$0xff]
    %v79 = vld [vmem:[%s2 + $0xd8] sm:$0xff]
    %v80 = vld [vmem:[%s2 + $0xe0] sm:$0xff]
    %v81 = vld [vmem:[%s2 + $0xe8] sm:$0xff]
    %v82 = vld [vmem:[%s2 + $0xf0] sm:$0xff]
    %v83 = vld [vmem:[%s2 + $0xf8] sm:$0xff]
    %vm84 = vcmask 261120
    %v86 = vsel %vm84, %v18, 0
    %v89 = vsel %vm84, %v20, 0
    %v92 = vsel %vm84, %v21, 0
    %v95 = vsel %vm84, %v22, 0
    %v98 = vsel %vm84, %v23, 0
    %v101 = vsel %vm84, %v24, 0
    %v104 = vsel %vm84, %v25, 0
    %v107 = vsel %vm84, %v26, 0
    %v110 = vsel %vm84, %v27, 0
    %v113 = vsel %vm84, %v28, 0
    %v116 = vsel %vm84, %v29, 0
    %v119 = vsel %vm84, %v30, 0
    %v122 = vsel %vm84, %v31, 0
    %v125 = vsel %vm84, %v32, 0
    %v128 = vsel %vm84, %v33, 0
    %v131 = vsel %vm84, %v34, 0
    %v134 = vsel %vm84, %v35, 0
    %136 = vmatprep.subr.mxu0 0.0
    %137 = vmatpush1.xpose.msra.mxu0 %v134
    %138 = vmatprep.subr.mxu0 0.0
    %139 = vmatpush1.xpose.msra.mxu0 %v131
    %140 = vmatprep.subr.mxu0 0.0
    %141 = vmatpush1.xpose.msra.mxu0 %v128
    %142 = vmatprep.subr.mxu0 0.0
    %143 = vmatpush1.xpose.msra.mxu0 %v125
    %144 = vmatprep.subr.mxu0 0.0
    %145 = vmatpush1.xpose.msra.mxu0 %v122
    %146 = vmatprep.subr.mxu0 0.0
    %147 = vmatpush1.xpose.msra.mxu0 %v119
    %148 = vmatprep.subr.mxu0 0.0
    %149 = vmatpush1.xpose.msra.mxu0 %v116
    %150 = vmatprep.subr.mxu0 0.0
    %151 = vmatpush1.xpose.msra.mxu0 %v113
    %152 = vmatprep.subr.mxu0 0.0
    %153 = vmatpush1.xpose.msra.mxu0 %v110
    %154 = vmatprep.subr.mxu0 0.0
    %155 = vmatpush1.xpose.msra.mxu0 %v107
    %156 = vmatprep.subr.mxu0 0.0
    %157 = vmatpush1.xpose.msra.mxu0 %v104
    %158 = vmatprep.subr.mxu0 0.0
    %159 = vmatpush1.xpose.msra.mxu0 %v101
    %160 = vmatprep.subr.mxu0 0.0
    %161 = vmatpush1.xpose.msra.mxu0 %v98
    %162 = vmatprep.subr.mxu0 0.0
    %163 = vmatpush1.xpose.msra.mxu0 %v95
    %164 = vmatprep.subr.mxu0 0.0
    %165 = vmatpush1.xpose.msra.mxu0 %v92
    %166 = vmatprep.subr.mxu0 0.0
    %167 = vmatpush1.xpose.msra.mxu0 %v89
    %168 = vmatprep.subr.mxu0 0.0
    %169 = vmatpush2.xpose.msra.mxu0 0.0
    %170 = vmatprep.subr.mxu0 0.0
    %171 = vmatpush2.xpose.msra.mxu0 0.0
    %172 = vmatprep.subr.mxu0 0.0
    %173 = vmatpush2.xpose.msra.mxu0 0.0
    %174 = vmatprep.subr.mxu0 0.0
    %175 = vmatpush2.xpose.msra.mxu0 0.0
    %176 = vmatprep.subr.mxu0 0.0
    %177 = vmatpush2.xpose.msra.mxu0 0.0
    %178 = vmatprep.subr.mxu0 0.0
    %179 = vmatpush2.xpose.msra.mxu0 0.0
    %180 = vmatprep.subr.mxu0 0.0
    %181 = vmatpush2.xpose.msra.mxu0 0.0
    %182 = vmatprep.subr.mxu0 0.0
    %183 = vmatpush2.xpose.msra.mxu0 0.0
    %184 = vmatprep.subr.mxu0 0.0
    %185 = vmatpush2.xpose.msra.mxu0 0.0
    %186 = vmatprep.subr.mxu0 0.0
    %187 = vmatpush2.xpose.msra.mxu0 0.0
    %188 = vmatprep.subr.mxu0 0.0
    %189 = vmatpush2.xpose.msra.mxu0 0.0
    %190 = vmatprep.subr.mxu0 0.0
    %191 = vmatpush2.xpose.msra.mxu0 0.0
    %192 = vmatprep.subr.mxu0 0.0
    %193 = vmatpush2.xpose.msra.mxu0 0.0
    %194 = vmatprep.subr.mxu0 0.0
    %195 = vmatpush2.xpose.msra.mxu0 0.0
    %196 = vmatprep.subr.mxu0 0.0
    %197 = vmatpush2.xpose.msra.mxu0 0.0
    %198 = vmatprep.subr.mxu0 0.0
    %199 = vmatpush2.xpose.msra.mxu0 0.0
    %200 = vmatprep.mubr.f32.mxu0 0.0
    %201 = vmatmul.mubr.f32.gmra.mxu0 %v86
    %v202 = vpop.f32.mrf.mxu0
    %v203 = vadd.f32 0.0, %v202
    %v204 = vpop.f32.mrf.mxu0
    %205 = vdwg.mxu0
    %v207 = vsel %vm84, %v19, 0
    %v210 = vsel %vm84, %v36, 0
    %v213 = vsel %vm84, %v37, 0
    %v216 = vsel %vm84, %v38, 0
    %v219 = vsel %vm84, %v39, 0
    %v222 = vsel %vm84, %v40, 0
    %v225 = vsel %vm84, %v41, 0
    %v228 = vsel %vm84, %v42, 0
    %v231 = vsel %vm84, %v43, 0
    %v234 = vsel %vm84, %v44, 0
    %v237 = vsel %vm84, %v45, 0
    %v240 = vsel %vm84, %v46, 0
    %v243 = vsel %vm84, %v47, 0
    %v246 = vsel %vm84, %v48, 0
    %v249 = vsel %vm84, %v49, 0
    %v252 = vsel %vm84, %v50, 0
    %v255 = vsel %vm84, %v51, 0
    %257 = vmatprep.subr.mxu0 0.0
    %258 = vmatpush1.xpose.msra.mxu0 %v255
    %259 = vmatprep.subr.mxu0 0.0
    %260 = vmatpush1.xpose.msra.mxu0 %v252
    %261 = vmatprep.subr.mxu0 0.0
    %262 = vmatpush1.xpose.msra.mxu0 %v249
    %263 = vmatprep.subr.mxu0 0.0
    %264 = vmatpush1.xpose.msra.mxu0 %v246
    %265 = vmatprep.subr.mxu0 0.0
    %266 = vmatpush1.xpose.msra.mxu0 %v243
    %267 = vmatprep.subr.mxu0 0.0
    %268 = vmatpush1.xpose.msra.mxu0 %v240
    %269 = vmatprep.subr.mxu0 0.0
    %270 = vmatpush1.xpose.msra.mxu0 %v237
    %271 = vmatprep.subr.mxu0 0.0
    %272 = vmatpush1.xpose.msra.mxu0 %v234
    %273 = vmatprep.subr.mxu0 0.0
    %274 = vmatpush1.xpose.msra.mxu0 %v231
    %275 = vmatprep.subr.mxu0 0.0
    %276 = vmatpush1.xpose.msra.mxu0 %v228
    %277 = vmatprep.subr.mxu0 0.0
    %278 = vmatpush1.xpose.msra.mxu0 %v225
    %279 = vmatprep.subr.mxu0 0.0
    %280 = vmatpush1.xpose.msra.mxu0 %v222
    %281 = vmatprep.subr.mxu0 0.0
    %282 = vmatpush1.xpose.msra.mxu0 %v219
    %283 = vmatprep.subr.mxu0 0.0
    %284 = vmatpush1.xpose.msra.mxu0 %v216
    %285 = vmatprep.subr.mxu0 0.0
    %286 = vmatpush1.xpose.msra.mxu0 %v213
    %287 = vmatprep.subr.mxu0 0.0
    %288 = vmatpush1.xpose.msra.mxu0 %v210
    %289 = vmatprep.subr.mxu0 0.0
    %290 = vmatpush2.xpose.msra.mxu0 0.0
    %291 = vmatprep.subr.mxu0 0.0
    %292 = vmatpush2.xpose.msra.mxu0 0.0
    %293 = vmatprep.subr.mxu0 0.0
    %294 = vmatpush2.xpose.msra.mxu0 0.0
    %295 = vmatprep.subr.mxu0 0.0
    %296 = vmatpush2.xpose.msra.mxu0 0.0
    %297 = vmatprep.subr.mxu0 0.0
    %298 = vmatpush2.xpose.msra.mxu0 0.0
    %299 = vmatprep.subr.mxu0 0.0
    %300 = vmatpush2.xpose.msra.mxu0 0.0
    %301 = vmatprep.subr.mxu0 0.0
    %302 = vmatpush2.xpose.msra.mxu0 0.0
    %303 = vmatprep.subr.mxu0 0.0
    %304 = vmatpush2.xpose.msra.mxu0 0.0
    %305 = vmatprep.subr.mxu0 0.0
    %306 = vmatpush2.xpose.msra.mxu0 0.0
    %307 = vmatprep.subr.mxu0 0.0
    %308 = vmatpush2.xpose.msra.mxu0 0.0
    %309 = vmatprep.subr.mxu0 0.0
    %310 = vmatpush2.xpose.msra.mxu0 0.0
    %311 = vmatprep.subr.mxu0 0.0
    %312 = vmatpush2.xpose.msra.mxu0 0.0
    %313 = vmatprep.subr.mxu0 0.0
    %314 = vmatpush2.xpose.msra.mxu0 0.0
    %315 = vmatprep.subr.mxu0 0.0
    %316 = vmatpush2.xpose.msra.mxu0 0.0
    %317 = vmatprep.subr.mxu0 0.0
    %318 = vmatpush2.xpose.msra.mxu0 0.0
    %319 = vmatprep.subr.mxu0 0.0
    %320 = vmatpush2.xpose.msra.mxu0 0.0
    %321 = vmatprep.mubr.f32.mxu0 0.0
    %322 = vmatmul.mubr.f32.gmra.mxu0 %v207
    %v323 = vpop.f32.mrf.mxu0
    %v324 = vadd.f32 0.0, %v323
    %v325 = vpop.f32.mrf.mxu0
    %326 = vdwg.mxu0
    %v327 = vmul.f32 %v203, 0.17677669
    %v328 = vmul.f32 %v324, 0.17677669
    %v329 = vlaneseq
    %v330 = vand.u32 %v329, 127
    %vm331 = vcmp.lt.s32.totalorder %v330, 8
    %v332 = vsel %vm331, %v327, -inf
    %v333 = vsel %vm331, %v328, -inf
    %334 = vmax.xlane.f32.xlu0 %v332
    %v335 = vpop.xlane.xlu0 %334
    %336 = vmax.xlane.f32.xlu0 %v333
    %v337 = vpop.xlane.xlu0 %336
    %v338 = vsub.f32 %v332, %v335
    %v339 = vsub.f32 %v333, %v337
    %v340 = vmul.f32 %v338, 1.442695
    %v341 = vpow.pop %v340
    %v342 = vmul.f32 %v339, 1.442695
    %v343 = vpow.pop %v342
    %344 = vadd.xlane.f32.xlu0 %v341
    %v345 = vpop.xlane.xlu0 %344
    %346 = vadd.xlane.f32.xlu0 %v343
    %v347 = vpop.xlane.xlu0 %346
    %v348 = vrcp.pop %v345
    %v349 = vrcp.pop %v347
    %v350 = vmul.f32 %v341, %v348
    %v351 = vmul.f32 %v343, %v349
    %352 = vmatprep.subr.mxu0 0.0
    %353 = vmatpush1.msra.mxu0 %v67
    %354 = vmatprep.subr.mxu0 0.0
    %355 = vmatpush1.msra.mxu0 %v66
    %356 = vmatprep.subr.mxu0 0.0
    %357 = vmatpush1.msra.mxu0 %v65
    %358 = vmatprep.subr.mxu0 0.0
    %359 = vmatpush1.msra.mxu0 %v64
    %360 = vmatprep.subr.mxu0 0.0
    %361 = vmatpush1.msra.mxu0 %v63
    %362 = vmatprep.subr.mxu0 0.0
    %363 = vmatpush1.msra.mxu0 %v62
    %364 = vmatprep.subr.mxu0 0.0
    %365 = vmatpush1.msra.mxu0 %v61
    %366 = vmatprep.subr.mxu0 0.0
    %367 = vmatpush1.msra.mxu0 %v60
    %368 = vmatprep.subr.mxu0 0.0
    %369 = vmatpush1.msra.mxu0 %v59
    %370 = vmatprep.subr.mxu0 0.0
    %371 = vmatpush1.msra.mxu0 %v58
    %372 = vmatprep.subr.mxu0 0.0
    %373 = vmatpush1.msra.mxu0 %v57
    %374 = vmatprep.subr.mxu0 0.0
    %375 = vmatpush1.msra.mxu0 %v56
    %376 = vmatprep.subr.mxu0 0.0
    %377 = vmatpush1.msra.mxu0 %v55
    %378 = vmatprep.subr.mxu0 0.0
    %379 = vmatpush1.msra.mxu0 %v54
    %380 = vmatprep.subr.mxu0 0.0
    %381 = vmatpush1.msra.mxu0 %v53
    %382 = vmatprep.subr.mxu0 0.0
    %383 = vmatpush1.msra.mxu0 %v52
    %384 = vmatprep.subr.mxu0 0.0
    %385 = vmatpush2.msra.mxu0 0.0
    %386 = vmatprep.subr.mxu0 0.0
    %387 = vmatpush2.msra.mxu0 0.0
    %388 = vmatprep.subr.mxu0 0.0
    %389 = vmatpush2.msra.mxu0 0.0
    %390 = vmatprep.subr.mxu0 0.0
    %391 = vmatpush2.msra.mxu0 0.0
    %392 = vmatprep.subr.mxu0 0.0
    %393 = vmatpush2.msra.mxu0 0.0
    %394 = vmatprep.subr.mxu0 0.0
    %395 = vmatpush2.msra.mxu0 0.0
    %396 = vmatprep.subr.mxu0 0.0
    %397 = vmatpush2.msra.mxu0 0.0
    %398 = vmatprep.subr.mxu0 0.0
    %399 = vmatpush2.msra.mxu0 0.0
    %400 = vmatprep.subr.mxu0 0.0
    %401 = vmatpush2.msra.mxu0 0.0
    %402 = vmatprep.subr.mxu0 0.0
    %403 = vmatpush2.msra.mxu0 0.0
    %404 = vmatprep.subr.mxu0 0.0
    %405 = vmatpush2.msra.mxu0 0.0
    %406 = vmatprep.subr.mxu0 0.0
    %407 = vmatpush2.msra.mxu0 0.0
    %408 = vmatprep.subr.mxu0 0.0
    %409 = vmatpush2.msra.mxu0 0.0
    %410 = vmatprep.subr.mxu0 0.0
    %411 = vmatpush2.msra.mxu0 0.0
    %412 = vmatprep.subr.mxu0 0.0
    %413 = vmatpush2.msra.mxu0 0.0
    %414 = vmatprep.subr.mxu0 0.0
    %415 = vmatpush2.msra.mxu0 0.0
    %416 = vmatprep.mubr.f32.mxu0 0.0
    %417 = vmatmul.mubr.f32.gmra.mxu0 %v350
    %v418 = vpop.f32.mrf.mxu0
    %v419 = vadd.f32 0.0, %v418
    %v420 = vpop.f32.mrf.mxu0
    %421 = vdwg.mxu0
    %422 = vmatprep.subr.mxu0 0.0
    %423 = vmatpush1.msra.mxu0 %v83
    %424 = vmatprep.subr.mxu0 0.0
    %425 = vmatpush1.msra.mxu0 %v82
    %426 = vmatprep.subr.mxu0 0.0
    %427 = vmatpush1.msra.mxu0 %v81
    %428 = vmatprep.subr.mxu0 0.0
    %429 = vmatpush1.msra.mxu0 %v80
    %430 = vmatprep.subr.mxu0 0.0
    %431 = vmatpush1.msra.mxu0 %v79
    %432 = vmatprep.subr.mxu0 0.0
    %433 = vmatpush1.msra.mxu0 %v78
    %434 = vmatprep.subr.mxu0 0.0
    %435 = vmatpush1.msra.mxu0 %v77
    %436 = vmatprep.subr.mxu0 0.0
    %437 = vmatpush1.msra.mxu0 %v76
    %438 = vmatprep.subr.mxu0 0.0
    %439 = vmatpush1.msra.mxu0 %v75
    %440 = vmatprep.subr.mxu0 0.0
    %441 = vmatpush1.msra.mxu0 %v74
    %442 = vmatprep.subr.mxu0 0.0
    %443 = vmatpush1.msra.mxu0 %v73
    %444 = vmatprep.subr.mxu0 0.0
    %445 = vmatpush1.msra.mxu0 %v72
    %446 = vmatprep.subr.mxu0 0.0
    %447 = vmatpush1.msra.mxu0 %v71
    %448 = vmatprep.subr.mxu0 0.0
    %449 = vmatpush1.msra.mxu0 %v70
    %450 = vmatprep.subr.mxu0 0.0
    %451 = vmatpush1.msra.mxu0 %v69
    %452 = vmatprep.subr.mxu0 0.0
    %453 = vmatpush1.msra.mxu0 %v68
    %454 = vmatprep.subr.mxu0 0.0
    %455 = vmatpush2.msra.mxu0 0.0
    %456 = vmatprep.subr.mxu0 0.0
    %457 = vmatpush2.msra.mxu0 0.0
    %458 = vmatprep.subr.mxu0 0.0
    %459 = vmatpush2.msra.mxu0 0.0
    %460 = vmatprep.subr.mxu0 0.0
    %461 = vmatpush2.msra.mxu0 0.0
    %462 = vmatprep.subr.mxu0 0.0
    %463 = vmatpush2.msra.mxu0 0.0
    %464 = vmatprep.subr.mxu0 0.0
    %465 = vmatpush2.msra.mxu0 0.0
    %466 = vmatprep.subr.mxu0 0.0
    %467 = vmatpush2.msra.mxu0 0.0
    %468 = vmatprep.subr.mxu0 0.0
    %469 = vmatpush2.msra.mxu0 0.0
    %470 = vmatprep.subr.mxu0 0.0
    %471 = vmatpush2.msra.mxu0 0.0
    %472 = vmatprep.subr.mxu0 0.0
    %473 = vmatpush2.msra.mxu0 0.0
    %474 = vmatprep.subr.mxu0 0.0
    %475 = vmatpush2.msra.mxu0 0.0
    %476 = vmatprep.subr.mxu0 0.0
    %477 = vmatpush2.msra.mxu0 0.0
    %478 = vmatprep.subr.mxu0 0.0
    %479 = vmatpush2.msra.mxu0 0.0
    %480 = vmatprep.subr.mxu0 0.0
    %481 = vmatpush2.msra.mxu0 0.0
    %482 = vmatprep.subr.mxu0 0.0
    %483 = vmatpush2.msra.mxu0 0.0
    %484 = vmatprep.subr.mxu0 0.0
    %485 = vmatpush2.msra.mxu0 0.0
    %486 = vmatprep.mubr.f32.mxu0 0.0
    %487 = vmatmul.mubr.f32.gmra.mxu0 %v351
    %v488 = vpop.f32.mrf.mxu0
    %v489 = vadd.f32 0.0, %v488
    %v490 = vpop.f32.mrf.mxu0
    %491 = vdwg.mxu0
    %492 = vst [vmem:[#allocation2] sm:$0xff] %v419
    %493 = vst [vmem:[#allocation2 + $0x8] sm:$0xff] %v489
    %494 = vst [vmem:[#allocation4] sm:$0xff] %v350
    %495 = vst [vmem:[#allocation4 + $0x8] sm:$0xff] %v351
    // Predicated region
    $region14: #{tpu_custom_call.1} parent=1 // pred_check
      _
    $region15: #{tpu_custom_call.1} parent=1 // pred_check_branch
      %497 = sbr.rel (0) target = $region17
    $region16: #{tpu_custom_call.1} parent=1 // pred_region
      %s499 = ssub.s32 256, 256
      %500 = vsyncadd [#allocation3], %s499
      %s501 = sshll.u32 [#allocation2], 4
      %s502 = int_to_ptr.vmem [resolvable:$true] %s501
      %507 = dma.vmem_to_hbm [thread:$0]  %s502, 256, %s3, [#allocation3], 128, 128, 8
    $region17: #{tpu_custom_call.1} parent=1 // pred_fallthru
      _
    // Predicated region
    $region18: #{tpu_custom_call.1} parent=1 // pred_check
      _
    $region19: #{tpu_custom_call.1} parent=1 // pred_check_branch
      %509 = sbr.rel (0) target = $region21
    $region20: #{tpu_custom_call.1} parent=1 // pred_region
      %s511 = ssub.s32 256, 256
      %512 = vsyncadd [#allocation5], %s511
      %s513 = sshll.u32 [#allocation4], 4
      %s514 = int_to_ptr.vmem [resolvable:$true] %s513
      %519 = dma.vmem_to_hbm [thread:$0]  %s514, 256, %s4, [#allocation5], 128, 128, 8
    $region21: #{tpu_custom_call.1} parent=1 // pred_fallthru
      _
    // Predicated region
    $region22: #{tpu_custom_call.1} parent=1 // pred_check
      _
    $region23: #{tpu_custom_call.1} parent=1 // pred_check_branch
      %521 = sbr.rel (0) target = $region25
    $region24: #{tpu_custom_call.1} parent=1 // pred_region
      %522 = dma.done [#allocation3], 256
    $region25: #{tpu_custom_call.1} parent=1 // pred_fallthru
      _
    // Predicated region
    $region26: #{tpu_custom_call.1} parent=1 // pred_check
      _
    $region27: #{tpu_custom_call.1} parent=1 // pred_check_branch
      %524 = sbr.rel (0) target = $region29
    $region28: #{tpu_custom_call.1} parent=1 // pred_region
      %525 = dma.done [#allocation5], 256
    $region29: #{tpu_custom_call.1} parent=1 // pred_fallthru
      _
    %526 = vsyncpa [#allocation3], 1
    %527 = vsyncpa [#allocation5], 1

</llo_original>
